<compile_context>
chip_gen: v7x
topology: tpu7x:2x2x1
jax: 0.10.0
libtpu: 0.0.40
codegen_flags: <defaults>
</compile_context>

<pallas_src>
import functools

import jax
import jax.numpy as jnp
import numpy as np
from jax.experimental import pallas as pl
from jax.experimental.pallas import tpu as pltpu


def _round_up(a, b):
    return ((a + b - 1) // b) * b


def _leaky_ln(h, gamma, beta, *, eps=1e-5, slope=0.01):
    """LeakyReLU followed by two-pass LayerNorm (gamma folded into the scale)."""
    h = jnp.where(h >= 0, h, slope * h)
    mu = jnp.mean(h, axis=-1, keepdims=True)
    d = h - mu
    var = jnp.mean(d * d, axis=-1, keepdims=True)
    scale = gamma * jax.lax.rsqrt(var + eps)          # (rows,1)*(H,) -> (rows,H)
    return d * scale + beta


def bond_decoder_mlp_kernel(res_after_l1,
                            x_ref,
                            w0_ref, w1_ref, w2_ref, w3_ref,
                            vecs_ref, b3_ref,
                            o_ref):
    """Fused 4-layer MLP. vecs_ref rows: b0,g0,be0,b1,g1,be1,b2,g2,be2."""

    def mm(a, w_ref):
        # In-kernel cast of activations to the weight dtype (bf16 path rides
        # the VPU for free); MXU accumulates in f32.
        return jnp.dot(a.astype(w_ref.dtype), w_ref[...],
                       preferred_element_type=jnp.float32)

    x = x_ref[...]

    # i = 0: Linear -> LeakyReLU -> LayerNorm (no residual possible)
    h = mm(x, w0_ref) + vecs_ref[0, :]
    h = _leaky_ln(h, vecs_ref[1, :], vecs_ref[2, :])

    # i = 1: residual only if input_dim == hidden_dim (static flag)
    res1 = h
    h = mm(h, w1_ref) + vecs_ref[3, :]
    h = _leaky_ln(h, vecs_ref[4, :], vecs_ref[5, :])
    if res_after_l1:
        h = h + res1

    # i = 2: residual always active (hidden_dim == hidden_dim)
    res2 = h
    h = mm(h, w2_ref) + vecs_ref[6, :]
    h = _leaky_ln(h, vecs_ref[7, :], vecs_ref[8, :])
    h = h + res2

    # i = 3: final Linear (tril columns, optionally with symmetrize folded in),
    # lane-dense padded output width.
    o_ref[...] = (mm(h, w3_ref) + b3_ref[...]).astype(o_ref.dtype)


def enhanced_bond_decoder(x, params, sub_graph_node_num, *, tm=1024,
                          matmul_dtype=None, out_dtype=jnp.float32,
                          vmem_budget_bytes=32 * 1024 * 1024):
    """x: (B, S, input_dim) float32. Returns (B, S, n, n) symmetric adjacency.

    matmul_dtype: None -> f32 matmul operands (bit-matching the torch module);
      jnp.bfloat16 recommended on ALL TPU generations (v5e/v6e/v7x) - the MXU
      is bf16-native and weight DMA halves; accumulation stays f32.
    out_dtype: kernel output / adjacency dtype. bf16 halves the dominant HBM
      writeback; upcast downstream if f32 is required.
    """
    assert x.ndim == 3, "EnhancedBondDecoder: input must be rank 3"
    B, S, F = x.shape
    M = B * S

    (w0, b0, g0, be0, w1, b1, g1, be1, w2, b2, g2, be2, w3, b3) = params
    H = w0.shape[1]
    n = sub_graph_node_num
    out_dim = w3.shape[1]
    assert out_dim == (n - 1) * n // 2
    res_after_l1 = bool(F == H)

    # ---- Final-layer layout: fold symmetrize in, or gather in the wrapper. ----
    ti, tj = np.tril_indices(n, k=-1)          # row-major == torch.tril_indices
    fold_sym = _round_up(n * n, 128) == _round_up(max(out_dim, 1), 128)
    if fold_sym:
        # Emit the full (n*n) adjacency row directly: place each tril channel
        # at columns i*n+j and j*n+i (index assignment; no dense P matmul).
        out_pad = _round_up(n * n, 128)
        cols_ij = jnp.asarray(ti * n + tj)
        cols_ji = jnp.asarray(tj * n + ti)
        w3p = (jnp.zeros((H, out_pad), w3.dtype)
               .at[:, cols_ij].set(w3).at[:, cols_ji].set(w3))
        b3p = (jnp.zeros((1, out_pad), b3.dtype)
               .at[:, cols_ij].set(b3).at[:, cols_ji].set(b3))
        gather_idx = None
    else:
        # Emit only the tril channels (half the matmul width / writeback at
        # large n); symmetrize with a lane gather in the wrapper.
        out_pad = _round_up(out_dim, 128)
        if out_pad == out_dim:
            out_pad += 128                      # guarantee a zero column
        zero_col = out_dim                      # padded column -> exact 0
        w3p = jnp.zeros((H, out_pad), w3.dtype).at[:, :out_dim].set(w3)
        b3p = jnp.zeros((1, out_pad), b3.dtype).at[:, :out_dim].set(b3)
        idx = np.full((n, n), zero_col, np.int64)
        ch = np.arange(out_dim)
        idx[ti, tj] = ch
        idx[tj, ti] = ch
        gather_idx = jnp.asarray(idx.reshape(-1), jnp.int32)

    # Pack the nine (1, H) vectors into one (9, H) input (f32).
    vecs = jnp.concatenate([b0, g0, be0, b1, g1, be1, b2, g2, be2], axis=0)

    if matmul_dtype is not None:
        w0c, w1c, w2c, w3c = (w.astype(matmul_dtype) for w in (w0, w1, w2, w3p))
    else:
        w0c, w1c, w2c, w3c = w0, w1, w2, w3p
    # NOTE: x stays f32 in HBM; the bf16 cast happens inside the kernel.

    x2 = x.reshape(M, F)
    out_itemsize = jnp.dtype(out_dtype).itemsize
    const_inputs = (w0c, w1c, w2c, w3c, vecs, b3p)
    weight_bytes = int(sum(int(a.size) * jnp.dtype(a.dtype).itemsize
                           for a in const_inputs))

    # ---- Row tiling ------------------------------------------------------
    # * >= 4 grid steps when M allows (2 steps per TensorCore on v7x, full
    #   double-buffer overlap on v5e/v6e).
    # * tm capped by the scoped-VMEM budget: double-buffered row tiles,
    #   double-buffered constants, plus ~6 live (tm, H) f32 intermediates.
    per_row_bytes = 2 * (F * 4 + out_pad * out_itemsize) + 6 * H * 4
    avail = max(vmem_budget_bytes - 2 * weight_bytes - (2 << 20),
                per_row_bytes * 8)
    tm_vmem_cap = max(8, (avail // per_row_bytes) // 8 * 8)
    tm_steps_cap = _round_up(pl.cdiv(M, 4), 8)
    tm_eff = max(8, min((int(tm) // 8) * 8, tm_vmem_cap, tm_steps_cap))

    M_pad = _round_up(M, tm_eff)
    if M_pad != M:
        x2 = jnp.pad(x2, ((0, M_pad - M), (0, 0)))
    grid = (M_pad // tm_eff,)

    vmem_est = (2 * tm_eff * (F * 4 + out_pad * out_itemsize)
                + 2 * weight_bytes + 6 * tm_eff * H * 4 + (2 << 20))
    vmem_limit = int(min(max(vmem_est, vmem_budget_bytes), 64 << 20))

    def full_spec(a):
        nd = a.ndim
        return pl.BlockSpec(a.shape, lambda i, _nd=nd: (0,) * _nd)

    row_spec = pl.BlockSpec((tm_eff, F), lambda i: (i, 0))
    out_spec = pl.BlockSpec((tm_eff, out_pad), lambda i: (i, 0))

    flops = 2 * M_pad * (F * H + 2 * H * H + H * out_pad)
    bytes_acc = int(M_pad * F * 4 + M_pad * out_pad * out_itemsize
                    + weight_bytes)
    cost = pl.CostEstimate(flops=flops, transcendentals=3 * M_pad,
                           bytes_accessed=bytes_acc)

    y = pl.pallas_call(
        functools.partial(bond_decoder_mlp_kernel, res_after_l1),
        out_shape=jax.ShapeDtypeStruct((M_pad, out_pad), out_dtype),
        grid=grid,
        in_specs=[row_spec,
                  full_spec(w0c), full_spec(w1c), full_spec(w2c), full_spec(w3c),
                  full_spec(vecs), full_spec(b3p)],
        out_specs=out_spec,
        compiler_params=pltpu.CompilerParams(
            dimension_semantics=("parallel",),
            vmem_limit_bytes=vmem_limit),
        cost_estimate=cost,
    )(x2, w0c, w1c, w2c, w3c, vecs, b3p)

    if fold_sym:
        # Adjacency already laid out row-major in the first n*n lanes.
        if M_pad == M and out_pad == n * n:
            return y.reshape(B, S, n, n)        # no depad copy at all
        return y[:M, :n * n].reshape(B, S, n, n)
    # Gather epilogue: full[i*n+j] = tril channel (or the zero column on the
    # diagonal). Cheap lane gather, no scatter, done at out_dtype width.
    return jnp.take(y[:M], gather_idx, axis=1).reshape(B, S, n, n)


def reference_forward(x, params, sub_graph_node_num):
    """Pure-JAX reference mirroring the PyTorch forward (eval mode, f32)."""
    (w0, b0, g0, be0, w1, b1, g1, be1, w2, b2, g2, be2, w3, b3) = params
    B, S, F = x.shape
    H = w0.shape[1]

    def leaky(v):
        return jnp.where(v >= 0, v, 0.01 * v)

    def layernorm(v, gamma, beta, eps=1e-5):
        mu = jnp.mean(v, axis=-1, keepdims=True)
        var = jnp.mean(jnp.square(v - mu), axis=-1, keepdims=True)
        return (v - mu) * jax.lax.rsqrt(var + eps) * gamma + beta

    h = x.reshape(-1, F)
    h = layernorm(leaky(h @ w0 + b0), g0, be0)
    res = h
    h = layernorm(leaky(h @ w1 + b1), g1, be1)
    if F == H:
        h = h + res
    res = h
    h = layernorm(leaky(h @ w2 + b2), g2, be2) + res
    y = h @ w3 + b3

    n = sub_graph_node_num
    ti, tj = jnp.tril_indices(n, k=-1)
    y3 = y.reshape(B, S, -1)
    adj = jnp.zeros((B, S, n, n), y3.dtype)
    adj = adj.at[:, :, ti, tj].set(y3)
    return adj + jnp.swapaxes(adj, 2, 3)


def _make_params(key, input_dim, hidden_dim, n):
    out_dim = (n - 1) * n // 2
    keys = jax.random.split(key, 8)

    def linear_params(kw, kb, fan_in, fan_out):
        lim = 1.0 / float(np.sqrt(fan_in))
        w = jax.random.uniform(kw, (fan_in, fan_out), jnp.float32, -lim, lim)
        b = jax.random.uniform(kb, (1, fan_out), jnp.float32, -lim, lim)
        return w, b

    w0, b0 = linear_params(keys[0], keys[1], input_dim, hidden_dim)
    w1, b1 = linear_params(keys[2], keys[3], hidden_dim, hidden_dim)
    w2, b2 = linear_params(keys[4], keys[5], hidden_dim, hidden_dim)
    w3, b3 = linear_params(keys[6], keys[7], hidden_dim, out_dim)
    g = jnp.ones((1, hidden_dim), jnp.float32)
    be = jnp.zeros((1, hidden_dim), jnp.float32)
    return (w0, b0, g, be, w1, b1, g, be, w2, b2, g, be, w3, b3)


if __name__ == "__main__":
    B, S = 2, 8
    input_dim, hidden_dim, n = 16, 32, 8

    key = jax.random.PRNGKey(0)
    kp, kx, kp2, kp3 = jax.random.split(key, 4)

    params = _make_params(kp, input_dim, hidden_dim, n)
    x = jax.random.normal(kx, (B, S, input_dim), jnp.float32)

    # --- Test 1: f32 path, fold-symmetrize layout (n=8). -------------------
    ref = jax.block_until_ready(reference_forward(x, params, n))
    adj = jax.block_until_ready(enhanced_bond_decoder(x, params, n))
    assert adj.shape == (B, S, n, n)
    np.testing.assert_allclose(np.asarray(adj), np.asarray(ref),
                               rtol=1e-4, atol=1e-4)
    np.testing.assert_allclose(np.asarray(adj),
                               np.asarray(jnp.swapaxes(adj, 2, 3)),
                               rtol=0, atol=0)

    # --- Test 2: bf16 matmul operands + bf16 output (recommended config). --
    adj_bf16 = jax.block_until_ready(
        enhanced_bond_decoder(x, params, n,
                              matmul_dtype=jnp.bfloat16,
                              out_dtype=jnp.bfloat16))
    np.testing.assert_allclose(np.asarray(adj_bf16.astype(jnp.float32)),
                               np.asarray(ref), rtol=5e-2, atol=5e-2)

    # --- Test 3: gather-epilogue layout (n*n pad != tril pad), n=17. --------
    n2 = 17
    params2 = _make_params(kp2, input_dim, hidden_dim, n2)
    ref2 = jax.block_until_ready(reference_forward(x, params2, n2))
    adj2 = jax.block_until_ready(enhanced_bond_decoder(x, params2, n2))
    assert adj2.shape == (B, S, n2, n2)
    np.testing.assert_allclose(np.asarray(adj2), np.asarray(ref2),
                               rtol=1e-4, atol=1e-4)

    # --- Test 4: residual after layer 1 active (input_dim == hidden_dim). --
    params3 = _make_params(kp3, hidden_dim, hidden_dim, n)
    x3 = jax.random.normal(jax.random.PRNGKey(1), (B, S, hidden_dim),
                           jnp.float32)
    ref3 = jax.block_until_ready(reference_forward(x3, params3, n))
    adj3 = jax.block_until_ready(enhanced_bond_decoder(x3, params3, n))
    np.testing.assert_allclose(np.asarray(adj3), np.asarray(ref3),
                               rtol=1e-4, atol=1e-4)

    print("KERNEL_OK")
</pallas_src>

<mosaic_0001>
module attributes {stable_mosaic.version = 11 : i64} {
  func.func @bond_decoder_mlp_kernel(%arg0: i32, %arg1: memref<8x16xf32, #tpu.memory_space<vmem>>, %arg2: memref<16x32xf32, #tpu.memory_space<vmem>>, %arg3: memref<32x32xf32, #tpu.memory_space<vmem>>, %arg4: memref<32x32xf32, #tpu.memory_space<vmem>>, %arg5: memref<32x128xf32, #tpu.memory_space<vmem>>, %arg6: memref<9x32xf32, #tpu.memory_space<vmem>>, %arg7: memref<1x128xf32, #tpu.memory_space<vmem>>, %arg8: memref<8x128xf32, #tpu.memory_space<vmem>>) attributes {dimension_semantics = [#tpu.dimension_semantics<parallel>], iteration_bounds = array<i64: 2>, scalar_prefetch = 0 : i64, scratch_operands = 0 : i64, tpu.core_type = #tpu.core_type<tc>, window_params = [{transform_indices = @transform_0, window_bounds = array<i64: 8, 16>}, {pipeline_mode = #tpu.pipeline_mode<synchronous>, transform_indices = @transform_1, window_bounds = array<i64: 16, 32>}, {pipeline_mode = #tpu.pipeline_mode<synchronous>, transform_indices = @transform_2, window_bounds = array<i64: 32, 32>}, {pipeline_mode = #tpu.pipeline_mode<synchronous>, transform_indices = @transform_3, window_bounds = array<i64: 32, 32>}, {pipeline_mode = #tpu.pipeline_mode<synchronous>, transform_indices = @transform_4, window_bounds = array<i64: 32, 128>}, {pipeline_mode = #tpu.pipeline_mode<synchronous>, transform_indices = @transform_5, window_bounds = array<i64: 9, 32>}, {pipeline_mode = #tpu.pipeline_mode<synchronous>, transform_indices = @transform_6, window_bounds = array<i64: 1, 128>}, {transform_indices = @transform_7, window_bounds = array<i64: 8, 128>}]} {
    %c0 = arith.constant 0 : index
    %c0_0 = arith.constant 0 : index
    %0 = vector.load %arg1[%c0, %c0_0] : memref<8x16xf32, #tpu.memory_space<vmem>>, vector<8x16xf32>
    %c0_1 = arith.constant 0 : index
    %c0_2 = arith.constant 0 : index
    %1 = vector.load %arg2[%c0_1, %c0_2] : memref<16x32xf32, #tpu.memory_space<vmem>>, vector<16x32xf32>
    %cst = arith.constant dense<0.000000e+00> : vector<8x32xf32>
    %2 = tpu.matmul %0, %1, %cst {dimension_numbers = #tpu.dot_dimension_numbers<[1], [0], [0], [1], [0, 0, 1, 1], [], []>} : vector<8x16xf32>, vector<16x32xf32>, vector<8x32xf32> -> vector<8x32xf32>
    %c0_3 = arith.constant 0 : index
    %c0_4 = arith.constant 0 : index
    %3 = vector.load %arg6[%c0_3, %c0_4] : memref<9x32xf32, #tpu.memory_space<vmem>>, vector<1x32xf32>
    %4 = vector.shape_cast %3 : vector<1x32xf32> to vector<32xf32>
    %5 = vector.shape_cast %4 : vector<32xf32> to vector<1x32xf32>
    %6 = vector.broadcast %5 : vector<1x32xf32> to vector<8x32xf32>
    %7 = arith.addf %2, %6 : vector<8x32xf32>
    %c1 = arith.constant 1 : index
    %c0_5 = arith.constant 0 : index
    %8 = vector.load %arg6[%c1, %c0_5] : memref<9x32xf32, #tpu.memory_space<vmem>>, vector<1x32xf32>
    %9 = vector.shape_cast %8 : vector<1x32xf32> to vector<32xf32>
    %c2 = arith.constant 2 : index
    %c0_6 = arith.constant 0 : index
    %10 = vector.load %arg6[%c2, %c0_6] : memref<9x32xf32, #tpu.memory_space<vmem>>, vector<1x32xf32>
    %11 = vector.shape_cast %10 : vector<1x32xf32> to vector<32xf32>
    %cst_7 = arith.constant 0.000000e+00 : f32
    %12 = vector.broadcast %cst_7 : f32 to vector<8x32xf32>
    %13 = arith.cmpf oge, %7, %12 : vector<8x32xf32>
    %cst_8 = arith.constant 0.00999999977 : f32
    %14 = vector.broadcast %cst_8 : f32 to vector<8x32xf32>
    %15 = arith.mulf %14, %7 : vector<8x32xf32>
    %16 = arith.select %13, %7, %15 : vector<8x32xi1>, vector<8x32xf32>
    %cst_9 = arith.constant dense<0.000000e+00> : vector<8xf32>
    %17 = vector.multi_reduction <add>, %16, %cst_9 [1] : vector<8x32xf32> to vector<8xf32>
    %18 = vector.shape_cast %17 : vector<8xf32> to vector<8x1xf32>
    %cst_10 = arith.constant 3.200000e+01 : f32
    %19 = vector.broadcast %cst_10 : f32 to vector<8x1xf32>
    %20 = arith.divf %18, %19 : vector<8x1xf32>
    %21 = vector.broadcast %20 : vector<8x1xf32> to vector<8x32xf32>
    %22 = arith.subf %16, %21 : vector<8x32xf32>
    %23 = arith.mulf %22, %22 : vector<8x32xf32>
    %cst_11 = arith.constant dense<0.000000e+00> : vector<8xf32>
    %24 = vector.multi_reduction <add>, %23, %cst_11 [1] : vector<8x32xf32> to vector<8xf32>
    %25 = vector.shape_cast %24 : vector<8xf32> to vector<8x1xf32>
    %cst_12 = arith.constant 3.200000e+01 : f32
    %26 = vector.broadcast %cst_12 : f32 to vector<8x1xf32>
    %27 = arith.divf %25, %26 : vector<8x1xf32>
    %cst_13 = arith.constant 9.99999974E-6 : f32
    %28 = vector.broadcast %cst_13 : f32 to vector<8x1xf32>
    %29 = arith.addf %27, %28 : vector<8x1xf32>
    %30 = math.rsqrt %29 : vector<8x1xf32>
    %31 = vector.shape_cast %9 : vector<32xf32> to vector<1x32xf32>
    %32 = vector.broadcast %31 : vector<1x32xf32> to vector<8x32xf32>
    %33 = vector.broadcast %30 : vector<8x1xf32> to vector<8x32xf32>
    %34 = arith.mulf %32, %33 : vector<8x32xf32>
    %35 = arith.mulf %22, %34 : vector<8x32xf32>
    %36 = vector.shape_cast %11 : vector<32xf32> to vector<1x32xf32>
    %37 = vector.broadcast %36 : vector<1x32xf32> to vector<8x32xf32>
    %38 = arith.addf %35, %37 : vector<8x32xf32>
    %c0_14 = arith.constant 0 : index
    %c0_15 = arith.constant 0 : index
    %39 = vector.load %arg3[%c0_14, %c0_15] : memref<32x32xf32, #tpu.memory_space<vmem>>, vector<32x32xf32>
    %cst_16 = arith.constant dense<0.000000e+00> : vector<8x32xf32>
    %40 = tpu.matmul %38, %39, %cst_16 {dimension_numbers = #tpu.dot_dimension_numbers<[1], [0], [0], [1], [0, 0, 1, 1], [], []>} : vector<8x32xf32>, vector<32x32xf32>, vector<8x32xf32> -> vector<8x32xf32>
    %c3 = arith.constant 3 : index
    %c0_17 = arith.constant 0 : index
    %41 = vector.load %arg6[%c3, %c0_17] : memref<9x32xf32, #tpu.memory_space<vmem>>, vector<1x32xf32>
    %42 = vector.shape_cast %41 : vector<1x32xf32> to vector<32xf32>
    %43 = vector.shape_cast %42 : vector<32xf32> to vector<1x32xf32>
    %44 = vector.broadcast %43 : vector<1x32xf32> to vector<8x32xf32>
    %45 = arith.addf %40, %44 : vector<8x32xf32>
    %c4 = arith.constant 4 : index
    %c0_18 = arith.constant 0 : index
    %46 = vector.load %arg6[%c4, %c0_18] : memref<9x32xf32, #tpu.memory_space<vmem>>, vector<1x32xf32>
    %47 = vector.shape_cast %46 : vector<1x32xf32> to vector<32xf32>
    %c5 = arith.constant 5 : index
    %c0_19 = arith.constant 0 : index
    %48 = vector.load %arg6[%c5, %c0_19] : memref<9x32xf32, #tpu.memory_space<vmem>>, vector<1x32xf32>
    %49 = vector.shape_cast %48 : vector<1x32xf32> to vector<32xf32>
    %cst_20 = arith.constant 0.000000e+00 : f32
    %50 = vector.broadcast %cst_20 : f32 to vector<8x32xf32>
    %51 = arith.cmpf oge, %45, %50 : vector<8x32xf32>
    %cst_21 = arith.constant 0.00999999977 : f32
    %52 = vector.broadcast %cst_21 : f32 to vector<8x32xf32>
    %53 = arith.mulf %52, %45 : vector<8x32xf32>
    %54 = arith.select %51, %45, %53 : vector<8x32xi1>, vector<8x32xf32>
    %cst_22 = arith.constant dense<0.000000e+00> : vector<8xf32>
    %55 = vector.multi_reduction <add>, %54, %cst_22 [1] : vector<8x32xf32> to vector<8xf32>
    %56 = vector.shape_cast %55 : vector<8xf32> to vector<8x1xf32>
    %cst_23 = arith.constant 3.200000e+01 : f32
    %57 = vector.broadcast %cst_23 : f32 to vector<8x1xf32>
    %58 = arith.divf %56, %57 : vector<8x1xf32>
    %59 = vector.broadcast %58 : vector<8x1xf32> to vector<8x32xf32>
    %60 = arith.subf %54, %59 : vector<8x32xf32>
    %61 = arith.mulf %60, %60 : vector<8x32xf32>
    %cst_24 = arith.constant dense<0.000000e+00> : vector<8xf32>
    %62 = vector.multi_reduction <add>, %61, %cst_24 [1] : vector<8x32xf32> to vector<8xf32>
    %63 = vector.shape_cast %62 : vector<8xf32> to vector<8x1xf32>
    %cst_25 = arith.constant 3.200000e+01 : f32
    %64 = vector.broadcast %cst_25 : f32 to vector<8x1xf32>
    %65 = arith.divf %63, %64 : vector<8x1xf32>
    %cst_26 = arith.constant 9.99999974E-6 : f32
    %66 = vector.broadcast %cst_26 : f32 to vector<8x1xf32>
    %67 = arith.addf %65, %66 : vector<8x1xf32>
    %68 = math.rsqrt %67 : vector<8x1xf32>
    %69 = vector.shape_cast %47 : vector<32xf32> to vector<1x32xf32>
    %70 = vector.broadcast %69 : vector<1x32xf32> to vector<8x32xf32>
    %71 = vector.broadcast %68 : vector<8x1xf32> to vector<8x32xf32>
    %72 = arith.mulf %70, %71 : vector<8x32xf32>
    %73 = arith.mulf %60, %72 : vector<8x32xf32>
    %74 = vector.shape_cast %49 : vector<32xf32> to vector<1x32xf32>
    %75 = vector.broadcast %74 : vector<1x32xf32> to vector<8x32xf32>
    %76 = arith.addf %73, %75 : vector<8x32xf32>
    %c0_27 = arith.constant 0 : index
    %c0_28 = arith.constant 0 : index
    %77 = vector.load %arg4[%c0_27, %c0_28] : memref<32x32xf32, #tpu.memory_space<vmem>>, vector<32x32xf32>
    %cst_29 = arith.constant dense<0.000000e+00> : vector<8x32xf32>
    %78 = tpu.matmul %76, %77, %cst_29 {dimension_numbers = #tpu.dot_dimension_numbers<[1], [0], [0], [1], [0, 0, 1, 1], [], []>} : vector<8x32xf32>, vector<32x32xf32>, vector<8x32xf32> -> vector<8x32xf32>
    %c6 = arith.constant 6 : index
    %c0_30 = arith.constant 0 : index
    %79 = vector.load %arg6[%c6, %c0_30] : memref<9x32xf32, #tpu.memory_space<vmem>>, vector<1x32xf32>
    %80 = vector.shape_cast %79 : vector<1x32xf32> to vector<32xf32>
    %81 = vector.shape_cast %80 : vector<32xf32> to vector<1x32xf32>
    %82 = vector.broadcast %81 : vector<1x32xf32> to vector<8x32xf32>
    %83 = arith.addf %78, %82 : vector<8x32xf32>
    %c7 = arith.constant 7 : index
    %c0_31 = arith.constant 0 : index
    %84 = vector.load %arg6[%c7, %c0_31] : memref<9x32xf32, #tpu.memory_space<vmem>>, vector<1x32xf32>
    %85 = vector.shape_cast %84 : vector<1x32xf32> to vector<32xf32>
    %c8 = arith.constant 8 : index
    %c0_32 = arith.constant 0 : index
    %86 = vector.load %arg6[%c8, %c0_32] : memref<9x32xf32, #tpu.memory_space<vmem>>, vector<1x32xf32>
    %87 = vector.shape_cast %86 : vector<1x32xf32> to vector<32xf32>
    %cst_33 = arith.constant 0.000000e+00 : f32
    %88 = vector.broadcast %cst_33 : f32 to vector<8x32xf32>
    %89 = arith.cmpf oge, %83, %88 : vector<8x32xf32>
    %cst_34 = arith.constant 0.00999999977 : f32
    %90 = vector.broadcast %cst_34 : f32 to vector<8x32xf32>
    %91 = arith.mulf %90, %83 : vector<8x32xf32>
    %92 = arith.select %89, %83, %91 : vector<8x32xi1>, vector<8x32xf32>
    %cst_35 = arith.constant dense<0.000000e+00> : vector<8xf32>
    %93 = vector.multi_reduction <add>, %92, %cst_35 [1] : vector<8x32xf32> to vector<8xf32>
    %94 = vector.shape_cast %93 : vector<8xf32> to vector<8x1xf32>
    %cst_36 = arith.constant 3.200000e+01 : f32
    %95 = vector.broadcast %cst_36 : f32 to vector<8x1xf32>
    %96 = arith.divf %94, %95 : vector<8x1xf32>
    %97 = vector.broadcast %96 : vector<8x1xf32> to vector<8x32xf32>
    %98 = arith.subf %92, %97 : vector<8x32xf32>
    %99 = arith.mulf %98, %98 : vector<8x32xf32>
    %cst_37 = arith.constant dense<0.000000e+00> : vector<8xf32>
    %100 = vector.multi_reduction <add>, %99, %cst_37 [1] : vector<8x32xf32> to vector<8xf32>
    %101 = vector.shape_cast %100 : vector<8xf32> to vector<8x1xf32>
    %cst_38 = arith.constant 3.200000e+01 : f32
    %102 = vector.broadcast %cst_38 : f32 to vector<8x1xf32>
    %103 = arith.divf %101, %102 : vector<8x1xf32>
    %cst_39 = arith.constant 9.99999974E-6 : f32
    %104 = vector.broadcast %cst_39 : f32 to vector<8x1xf32>
    %105 = arith.addf %103, %104 : vector<8x1xf32>
    %106 = math.rsqrt %105 : vector<8x1xf32>
    %107 = vector.shape_cast %85 : vector<32xf32> to vector<1x32xf32>
    %108 = vector.broadcast %107 : vector<1x32xf32> to vector<8x32xf32>
    %109 = vector.broadcast %106 : vector<8x1xf32> to vector<8x32xf32>
    %110 = arith.mulf %108, %109 : vector<8x32xf32>
    %111 = arith.mulf %98, %110 : vector<8x32xf32>
    %112 = vector.shape_cast %87 : vector<32xf32> to vector<1x32xf32>
    %113 = vector.broadcast %112 : vector<1x32xf32> to vector<8x32xf32>
    %114 = arith.addf %111, %113 : vector<8x32xf32>
    %115 = arith.addf %114, %76 : vector<8x32xf32>
    %c0_40 = arith.constant 0 : index
    %c0_41 = arith.constant 0 : index
    %116 = vector.load %arg5[%c0_40, %c0_41] : memref<32x128xf32, #tpu.memory_space<vmem>>, vector<32x128xf32>
    %cst_42 = arith.constant dense<0.000000e+00> : vector<8x128xf32>
    %117 = tpu.matmul %115, %116, %cst_42 {dimension_numbers = #tpu.dot_dimension_numbers<[1], [0], [0], [1], [0, 0, 1, 1], [], []>} : vector<8x32xf32>, vector<32x128xf32>, vector<8x128xf32> -> vector<8x128xf32>
    %c0_43 = arith.constant 0 : index
    %c0_44 = arith.constant 0 : index
    %118 = vector.load %arg7[%c0_43, %c0_44] : memref<1x128xf32, #tpu.memory_space<vmem>>, vector<1x128xf32>
    %119 = vector.broadcast %118 : vector<1x128xf32> to vector<8x128xf32>
    %120 = arith.addf %117, %119 : vector<8x128xf32>
    %c0_45 = arith.constant 0 : index
    %c0_46 = arith.constant 0 : index
    %121 = vector.load %arg8[%c0_45, %c0_46] : memref<8x128xf32, #tpu.memory_space<vmem>>, vector<8x128xf32>
    tpu.vector_store %arg8[%c0_45, %c0_46], %120 {strides = array<i32>} : memref<8x128xf32, #tpu.memory_space<vmem>>, vector<8x128xf32>,
    return
  }
  func.func @transform_0(%arg0: i32) -> (i32, i32) {
    %c0_i32 = arith.constant 0 : i32
    %c0_i32_0 = arith.constant 0 : i32
    return %arg0, %c0_i32 : i32, i32
  }
  func.func @transform_1(%arg0: i32) -> (i32, i32) {
    %c0_i32 = arith.constant 0 : i32
    %c0_i32_0 = arith.constant 0 : i32
    %c0_i32_1 = arith.constant 0 : i32
    return %c0_i32, %c0_i32_0 : i32, i32
  }
  func.func @transform_2(%arg0: i32) -> (i32, i32) {
    %c0_i32 = arith.constant 0 : i32
    %c0_i32_0 = arith.constant 0 : i32
    %c0_i32_1 = arith.constant 0 : i32
    return %c0_i32, %c0_i32_0 : i32, i32
  }
  func.func @transform_3(%arg0: i32) -> (i32, i32) {
    %c0_i32 = arith.constant 0 : i32
    %c0_i32_0 = arith.constant 0 : i32
    %c0_i32_1 = arith.constant 0 : i32
    return %c0_i32, %c0_i32_0 : i32, i32
  }
  func.func @transform_4(%arg0: i32) -> (i32, i32) {
    %c0_i32 = arith.constant 0 : i32
    %c0_i32_0 = arith.constant 0 : i32
    %c0_i32_1 = arith.constant 0 : i32
    return %c0_i32, %c0_i32_0 : i32, i32
  }
  func.func @transform_5(%arg0: i32) -> (i32, i32) {
    %c0_i32 = arith.constant 0 : i32
    %c0_i32_0 = arith.constant 0 : i32
    %c0_i32_1 = arith.constant 0 : i32
    return %c0_i32, %c0_i32_0 : i32, i32
  }
  func.func @transform_6(%arg0: i32) -> (i32, i32) {
    %c0_i32 = arith.constant 0 : i32
    %c0_i32_0 = arith.constant 0 : i32
    %c0_i32_1 = arith.constant 0 : i32
    return %c0_i32, %c0_i32_0 : i32, i32
  }
  func.func @transform_7(%arg0: i32) -> (i32, i32) {
    %c0_i32 = arith.constant 0 : i32
    %c0_i32_0 = arith.constant 0 : i32
    return %arg0, %c0_i32 : i32, i32
  }
}

</mosaic_0001>

<llo_original>
// kernel: tpu_custom_call.1
$region0: #{tpu_custom_call.1}
  #allocation0 [shape = 'u32[]', space=smem, size = 0x4, offset = 0x4, fixed_abs, tag = 'smem constant byte address 0x4 - core index']
  #allocation1 [shape = 'u32[144,128]{1,0:T(1,128)}', space=vmem, size = 0x12000, scoped, tag = 'internal scratch']
  %s0 = inlined_call_operand.hbm [shape: f32[16,16], index: 0, kind: input, shape index: {}]
  %s1 = inlined_call_operand.hbm [shape: f32[16,32], index: 1, kind: input, shape index: {}]
  %s2 = inlined_call_operand.hbm [shape: f32[32,32], index: 2, kind: input, shape index: {}]
  %s3 = inlined_call_operand.hbm [shape: f32[32,32], index: 3, kind: input, shape index: {}]
  %s4 = inlined_call_operand.hbm [shape: f32[32,128], index: 4, kind: input, shape index: {}]
  %s5 = inlined_call_operand.vmem [shape: f32[9,32], index: 5, kind: input, shape index: {}]
  %s6 = inlined_call_operand.vmem [shape: f32[1,128], index: 6, kind: input, shape index: {}]
  %s7 = inlined_call_operand.hbm [shape: f32[16,128], index: 7, kind: output, shape index: {}]
  %s8 = sld [smem:[#allocation0]]
  $region81: #{tpu_custom_call.1} parent=0
    _
  %s10 = ssub.s32 1, %s8
  %s11 = scalar_select 0, %s10, %s8
  $region1: #{tpu_custom_call.1} parent=0
    #allocation2 [shape = 'u8[8192]{0}', space=vmem, size = 0x2000, scoped, tag = 'input window, operand 0']
    #allocation3 [shape = 's32[2]{0}', space=sflag, size = 0x8, scoped, tag = 'scoped memory for tpu_custom_call.1']
    #allocation4 [shape = 's32[2]{0}', space=sflag, size = 0x8, scoped, tag = 'scoped memory for tpu_custom_call.1']
    #allocation5 [shape = 'u8[8192]{0}', space=vmem, size = 0x2000, scoped, tag = 'input window, operand 1, single buffered']
    #allocation6 [shape = 's32[1]{0}', space=sflag, size = 0x4, scoped, tag = 'scoped memory for tpu_custom_call.1']
    #allocation7 [shape = 'u8[16384]{0}', space=vmem, size = 0x4000, scoped, tag = 'input window, operand 2, single buffered']
    #allocation8 [shape = 'u8[16384]{0}', space=vmem, size = 0x4000, scoped, tag = 'input window, operand 3, single buffered']
    #allocation9 [shape = 's32[1]{0}', space=sflag, size = 0x4, scoped, tag = 'scoped memory for tpu_custom_call.1']
    #allocation10 [shape = 'u8[16384]{0}', space=vmem, size = 0x4000, scoped, tag = 'input window, operand 4, single buffered']
    #allocation11 [shape = 'u8[8192]{0}', space=vmem, size = 0x2000, scoped, tag = 'output window, operand 0']
    %12 = vsyncpa [#allocation3], 0
    %s13 = scalar_lea.sflag [#allocation3], 1
    %14 = vsyncpa %s13, 0
    %15 = vsyncpa [#allocation6], 0
    %16 = vsyncpa [#allocation9], 0
    %17 = vsyncpa [#allocation4], 0
    %s18 = scalar_lea.sflag [#allocation4], 1
    %19 = vsyncpa %s18, 0
    loop: start=0, step=1, limit=4
    $region2: #{tpu_custom_call.1} parent=1 // loop_pre_header
      _
    $region3: #{tpu_custom_call.1} parent=1 // loop_header
      %s21 = sphi 0, %s25
      %p22 = scmp.ge.s32.totalorder %s21, 4
      %s31 = sphi 0, %s33
      %s34 = sphi 0, %s31
      %s35 = sphi 0, %s34
      %s51 = sphi 0, %s35
      %s55 = sphi 0, %s55
      %s57 = sphi 0, %s55
      %s58 = sphi 0, %s57
      %s72 = sphi 0, %s58
      %s76 = sphi 0, %s76
      %s78 = sphi 0, %s76
      %s79 = sphi 0, %s78
      %s93 = sphi 0, %s79
      %s97 = sphi 0, %s97
      %s99 = sphi 0, %s97
      %s100 = sphi 0, %s99
      %s114 = sphi 0, %s100
      %s118 = sphi 0, %s118
      %s120 = sphi 0, %s118
      %s121 = sphi 0, %s120
      %s135 = sphi 0, %s121
      %s139 = sphi 0, %s139
      %s141 = sphi 0, %s139
      %s142 = sphi 0, %s141
      %s156 = sphi 0, %s142
      %s160 = sphi 0, %s160
      %s162 = sphi 0, %s160
      %s163 = sphi 0, %s162
      %s177 = sphi 0, %s163
      %s183 = sphi 0, %s185
      %s186 = sphi 0, %s183
      %s187 = sphi 0, %s186
      %s203 = sphi 0, %s187
    $region4: #{tpu_custom_call.1} parent=1 // loop_header_branch
      %24 = sbr.rel (%p22) target = $region8
    $region5: #{tpu_custom_call.1} parent=1 // loop_body
      %s26 = ssub.s32 %s21, 1
      %s27 = ssub.s32 %s21, 2
      %s28 = sadd.s32 %s21, 1
      %s29 = ssub.s32 %s21, %s28
      %p30 = scmp.eq.s32.totalorder %s29, 0
      %s32 = sadd.s32 %s31, 1
      %s33 = scalar_select %p30, %s31, %s32
      %p36 = pneg %p30
      %p37 = scmp.eq.s32.totalorder %s21, 1
      %p38 = por %p36, %p37
      %p39 = scmp.ne.s32.totalorder %s31, %s34
      %p40 = scmp.eq.s32.totalorder %s21, 0
      %p41 = por %p39, %p40
      %p42 = scmp.ne.s32.totalorder %s31, %s34
      %p43 = scmp.eq.s32.totalorder %s26, 1
      %p44 = por %p42, %p43
      %p45 = scmp.ne.s32.totalorder %s34, %s35
      %p46 = scmp.eq.s32.totalorder %s26, 0
      %p47 = por %p45, %p46
      %p48 = scmp.ne.s32.totalorder %s34, %s35
      %p49 = scmp.eq.s32.totalorder %s27, 1
      %p50 = por %p48, %p49
      %p52 = scmp.ne.s32.totalorder %s35, %s51
      %p53 = scmp.eq.s32.totalorder %s27, 0
      %p54 = por %p52, %p53
      %s56 = sadd.s32 %s55, 1
      %p59 = scmp.eq.s32.totalorder %s21, 1
      %p60 = scmp.ne.s32.totalorder %s55, %s57
      %p61 = scmp.eq.s32.totalorder %s21, 0
      %p62 = por %p60, %p61
      %p63 = scmp.ne.s32.totalorder %s55, %s57
      %p64 = scmp.eq.s32.totalorder %s26, 1
      %p65 = por %p63, %p64
      %p66 = scmp.ne.s32.totalorder %s57, %s58
      %p67 = scmp.eq.s32.totalorder %s26, 0
      %p68 = por %p66, %p67
      %p69 = scmp.ne.s32.totalorder %s57, %s58
      %p70 = scmp.eq.s32.totalorder %s27, 1
      %p71 = por %p69, %p70
      %p73 = scmp.ne.s32.totalorder %s58, %s72
      %p74 = scmp.eq.s32.totalorder %s27, 0
      %p75 = por %p73, %p74
      %s77 = sadd.s32 %s76, 1
      %p80 = scmp.eq.s32.totalorder %s21, 1
      %p81 = scmp.ne.s32.totalorder %s76, %s78
      %p82 = scmp.eq.s32.totalorder %s21, 0
      %p83 = por %p81, %p82
      %p84 = scmp.ne.s32.totalorder %s76, %s78
      %p85 = scmp.eq.s32.totalorder %s26, 1
      %p86 = por %p84, %p85
      %p87 = scmp.ne.s32.totalorder %s78, %s79
      %p88 = scmp.eq.s32.totalorder %s26, 0
      %p89 = por %p87, %p88
      %p90 = scmp.ne.s32.totalorder %s78, %s79
      %p91 = scmp.eq.s32.totalorder %s27, 1
      %p92 = por %p90, %p91
      %p94 = scmp.ne.s32.totalorder %s79, %s93
      %p95 = scmp.eq.s32.totalorder %s27, 0
      %p96 = por %p94, %p95
      %s98 = sadd.s32 %s97, 1
      %p101 = scmp.eq.s32.totalorder %s21, 1
      %p102 = scmp.ne.s32.totalorder %s97, %s99
      %p103 = scmp.eq.s32.totalorder %s21, 0
      %p104 = por %p102, %p103
      %p105 = scmp.ne.s32.totalorder %s97, %s99
      %p106 = scmp.eq.s32.totalorder %s26, 1
      %p107 = por %p105, %p106
      %p108 = scmp.ne.s32.totalorder %s99, %s100
      %p109 = scmp.eq.s32.totalorder %s26, 0
      %p110 = por %p108, %p109
      %p111 = scmp.ne.s32.totalorder %s99, %s100
      %p112 = scmp.eq.s32.totalorder %s27, 1
      %p113 = por %p111, %p112
      %p115 = scmp.ne.s32.totalorder %s100, %s114
      %p116 = scmp.eq.s32.totalorder %s27, 0
      %p117 = por %p115, %p116
      %s119 = sadd.s32 %s118, 1
      %p122 = scmp.eq.s32.totalorder %s21, 1
      %p123 = scmp.ne.s32.totalorder %s118, %s120
      %p124 = scmp.eq.s32.totalorder %s21, 0
      %p125 = por %p123, %p124
      %p126 = scmp.ne.s32.totalorder %s118, %s120
      %p127 = scmp.eq.s32.totalorder %s26, 1
      %p128 = por %p126, %p127
      %p129 = scmp.ne.s32.totalorder %s120, %s121
      %p130 = scmp.eq.s32.totalorder %s26, 0
      %p131 = por %p129, %p130
      %p132 = scmp.ne.s32.totalorder %s120, %s121
      %p133 = scmp.eq.s32.totalorder %s27, 1
      %p134 = por %p132, %p133
      %p136 = scmp.ne.s32.totalorder %s121, %s135
      %p137 = scmp.eq.s32.totalorder %s27, 0
      %p138 = por %p136, %p137
      %s140 = sadd.s32 %s139, 1
      %p143 = scmp.eq.s32.totalorder %s21, 1
      %p144 = scmp.ne.s32.totalorder %s139, %s141
      %p145 = scmp.eq.s32.totalorder %s21, 0
      %p146 = por %p144, %p145
      %p147 = scmp.ne.s32.totalorder %s139, %s141
      %p148 = scmp.eq.s32.totalorder %s26, 1
      %p149 = por %p147, %p148
      %p150 = scmp.ne.s32.totalorder %s141, %s142
      %p151 = scmp.eq.s32.totalorder %s26, 0
      %p152 = por %p150, %p151
      %p153 = scmp.ne.s32.totalorder %s141, %s142
      %p154 = scmp.eq.s32.totalorder %s27, 1
      %p155 = por %p153, %p154
      %p157 = scmp.ne.s32.totalorder %s142, %s156
      %p158 = scmp.eq.s32.totalorder %s27, 0
      %p159 = por %p157, %p158
      %s161 = sadd.s32 %s160, 1
      %p164 = scmp.eq.s32.totalorder %s21, 1
      %p165 = scmp.ne.s32.totalorder %s160, %s162
      %p166 = scmp.eq.s32.totalorder %s21, 0
      %p167 = por %p165, %p166
      %p168 = scmp.ne.s32.totalorder %s160, %s162
      %p169 = scmp.eq.s32.totalorder %s26, 1
      %p170 = por %p168, %p169
      %p171 = scmp.ne.s32.totalorder %s162, %s163
      %p172 = scmp.eq.s32.totalorder %s26, 0
      %p173 = por %p171, %p172
      %p174 = scmp.ne.s32.totalorder %s162, %s163
      %p175 = scmp.eq.s32.totalorder %s27, 1
      %p176 = por %p174, %p175
      %p178 = scmp.ne.s32.totalorder %s163, %s177
      %p179 = scmp.eq.s32.totalorder %s27, 0
      %p180 = por %p178, %p179
      %s181 = ssub.s32 %s21, %s28
      %p182 = scmp.eq.s32.totalorder %s181, 0
      %s184 = sadd.s32 %s183, 1
      %s185 = scalar_select %p182, %s183, %s184
      %p188 = pneg %p182
      %p189 = scmp.eq.s32.totalorder %s21, 1
      %p190 = por %p188, %p189
      %p191 = scmp.ne.s32.totalorder %s183, %s186
      %p192 = scmp.eq.s32.totalorder %s21, 0
      %p193 = por %p191, %p192
      %p194 = scmp.ne.s32.totalorder %s183, %s186
      %p195 = scmp.eq.s32.totalorder %s26, 1
      %p196 = por %p194, %p195
      %p197 = scmp.ne.s32.totalorder %s186, %s187
      %p198 = scmp.eq.s32.totalorder %s26, 0
      %p199 = por %p197, %p198
      %p200 = scmp.ne.s32.totalorder %s186, %s187
      %p201 = scmp.eq.s32.totalorder %s27, 1
      %p202 = por %p200, %p201
      %p204 = scmp.ne.s32.totalorder %s187, %s203
      %p205 = scmp.eq.s32.totalorder %s27, 0
      %p206 = por %p204, %p205
      %p207 = scmp.le.s32.totalorder 1, %s21
      %p208 = scmp.lt.s32.totalorder %s21, 3
      %p209 = pnand %p207, %p208
      %p210 = pneg %p209
      // Predicated region
      $region9: #{tpu_custom_call.1} parent=5 // pred_check
        _
      $region10: #{tpu_custom_call.1} parent=5 // pred_check_branch
        %212 = sbr.rel (%p209) target = $region12
      $region11: #{tpu_custom_call.1} parent=5 // pred_region
        %s213 = ssub.s32 %s21, 1
        // Predicated region
        $region13: #{tpu_custom_call.1} parent=11 // pred_check
          %p214 = pneg %p68
        $region14: #{tpu_custom_call.1} parent=11 // pred_check_branch
          %216 = sbr.rel (%p214) target = $region16
        $region15: #{tpu_custom_call.1} parent=11 // pred_region
          %s218 = ssub.s32 256, 256
          %219 = vsyncadd [#allocation6], %s218
          %s220 = sshll.u32 [#allocation5], 4
          %s221 = int_to_ptr.vmem [resolvable:$true] %s220
          %226 = dma.hbm_to_vmem [thread:$0]  %s1, 256, %s221, [#allocation6], 128, 128, 8
        $region16: #{tpu_custom_call.1} parent=11 // pred_fallthru
          _
        // Predicated region
        $region17: #{tpu_custom_call.1} parent=11 // pred_check
          %p227 = pneg %p89
        $region18: #{tpu_custom_call.1} parent=11 // pred_check_branch
          %229 = sbr.rel (%p227) target = $region20
        $region19: #{tpu_custom_call.1} parent=11 // pred_region
          %s231 = ssub.s32 512, 512
          %232 = vsyncadd [#allocation6], %s231
          %s233 = sshll.u32 [#allocation7], 4
          %s234 = int_to_ptr.vmem [resolvable:$true] %s233
          %239 = dma.hbm_to_vmem [thread:$0]  %s2, 512, %s234, [#allocation6], 128, 128, 8
        $region20: #{tpu_custom_call.1} parent=11 // pred_fallthru
          _
        // Predicated region
        $region21: #{tpu_custom_call.1} parent=11 // pred_check
          %p240 = pneg %p110
        $region22: #{tpu_custom_call.1} parent=11 // pred_check_branch
          %242 = sbr.rel (%p240) target = $region24
        $region23: #{tpu_custom_call.1} parent=11 // pred_region
          %s244 = ssub.s32 512, 512
          %245 = vsyncadd [#allocation9], %s244
          %s246 = sshll.u32 [#allocation8], 4
          %s247 = int_to_ptr.vmem [resolvable:$true] %s246
          %252 = dma.hbm_to_vmem [thread:$0]  %s3, 512, %s247, [#allocation9], 128, 128, 8
        $region24: #{tpu_custom_call.1} parent=11 // pred_fallthru
          _
        // Predicated region
        $region25: #{tpu_custom_call.1} parent=11 // pred_check
          %p253 = pneg %p131
        $region26: #{tpu_custom_call.1} parent=11 // pred_check_branch
          %255 = sbr.rel (%p253) target = $region28
        $region27: #{tpu_custom_call.1} parent=11 // pred_region
          %s257 = ssub.s32 512, 512
          %258 = vsyncadd [#allocation9], %s257
          %s259 = sshll.u32 [#allocation10], 4
          %s260 = int_to_ptr.vmem [resolvable:$true] %s259
          %265 = dma.hbm_to_vmem [thread:$0]  %s4, 512, %s260, [#allocation9], 128, 128, 8
        $region28: #{tpu_custom_call.1} parent=11 // pred_fallthru
          _
        // Predicated region
        $region29: #{tpu_custom_call.1} parent=11 // pred_check
          %p266 = pneg %p152
        $region30: #{tpu_custom_call.1} parent=11 // pred_check_branch
          %268 = sbr.rel (%p266) target = $region32
        $region31: #{tpu_custom_call.1} parent=11 // pred_region
          _
        $region32: #{tpu_custom_call.1} parent=11 // pred_fallthru
          _
        // Predicated region
        $region33: #{tpu_custom_call.1} parent=11 // pred_check
          %p269 = pneg %p173
        $region34: #{tpu_custom_call.1} parent=11 // pred_check_branch
          %271 = sbr.rel (%p269) target = $region36
        $region35: #{tpu_custom_call.1} parent=11 // pred_region
          _
        $region36: #{tpu_custom_call.1} parent=11 // pred_fallthru
          _
      $region12: #{tpu_custom_call.1} parent=5 // pred_fallthru
        _
      %p272 = scmp.lt.s32.totalorder %s21, 2
      // Predicated region
      $region37: #{tpu_custom_call.1} parent=5 // pred_check
        %p273 = pneg %p272
      $region38: #{tpu_custom_call.1} parent=5 // pred_check_branch
        %275 = sbr.rel (%p273) target = $region40
      $region39: #{tpu_custom_call.1} parent=5 // pred_region
        // Predicated region
        $region41: #{tpu_custom_call.1} parent=39 // pred_check
          %p276 = pneg %p41
        $region42: #{tpu_custom_call.1} parent=39 // pred_check_branch
          %278 = sbr.rel (%p276) target = $region44
        $region43: #{tpu_custom_call.1} parent=39 // pred_region
          %s279 = sand.u32 %s31, 1
          %s280 = scalar_lea.sflag [#allocation3], %s279
          %s281 = sand.u32 %s31, 1
          %s282 = smul.addr %s281, 8
          %s283 = scalar_lea.vmem [#allocation2], %s282
          %s285 = ssub.s32 128, 128
          %286 = vsyncadd %s280, %s285
          %s287 = smul.addr %s21, 128
          %s288 = scalar_lea.hbm %s0, %s287
          %s290 = sshll.u32 %s283, 4
          %s291 = int_to_ptr.vmem [resolvable:$true] %s290
          %293 = dma.hbm_to_vmem [thread:$0]  %s288, 128, %s291, %s280
        $region44: #{tpu_custom_call.1} parent=39 // pred_fallthru
          _
      $region40: #{tpu_custom_call.1} parent=5 // pred_fallthru
        _
      %p294 = scmp.le.s32.totalorder 1, %s21
      %p295 = scmp.lt.s32.totalorder %s21, 3
      %p296 = pnand %p294, %p295
      %p297 = pneg %p296
      // Predicated region
      $region45: #{tpu_custom_call.1} parent=5 // pred_check
        _
      $region46: #{tpu_custom_call.1} parent=5 // pred_check_branch
        %299 = sbr.rel (%p296) target = $region48
      $region47: #{tpu_custom_call.1} parent=5 // pred_region
        %s300 = ssub.s32 %s21, 1
        %s301 = sand.u32 %s34, 1
        %s302 = scalar_lea.sflag [#allocation3], %s301
        %s303 = sand.u32 %s34, 1
        %s304 = smul.addr %s303, 8
        %s305 = scalar_lea.vmem [#allocation2], %s304
        // Predicated region
        $region49: #{tpu_custom_call.1} parent=47 // pred_check
          %p306 = pneg %p47
        $region50: #{tpu_custom_call.1} parent=47 // pred_check_branch
          %308 = sbr.rel (%p306) target = $region52
        $region51: #{tpu_custom_call.1} parent=47 // pred_region
          %309 = dma.done %s302, 128
        $region52: #{tpu_custom_call.1} parent=47 // pred_fallthru
          _
        // Predicated region
        $region53: #{tpu_custom_call.1} parent=47 // pred_check
          %p310 = pneg %p68
        $region54: #{tpu_custom_call.1} parent=47 // pred_check_branch
          %312 = sbr.rel (%p310) target = $region56
        $region55: #{tpu_custom_call.1} parent=47 // pred_region
          %313 = dma.done [#allocation6], 256
        $region56: #{tpu_custom_call.1} parent=47 // pred_fallthru
          _
        // Predicated region
        $region57: #{tpu_custom_call.1} parent=47 // pred_check
          %p314 = pneg %p89
        $region58: #{tpu_custom_call.1} parent=47 // pred_check_branch
          %316 = sbr.rel (%p314) target = $region60
        $region59: #{tpu_custom_call.1} parent=47 // pred_region
          %317 = dma.done [#allocation6], 512
        $region60: #{tpu_custom_call.1} parent=47 // pred_fallthru
          _
        // Predicated region
        $region61: #{tpu_custom_call.1} parent=47 // pred_check
          %p318 = pneg %p110
        $region62: #{tpu_custom_call.1} parent=47 // pred_check_branch
          %320 = sbr.rel (%p318) target = $region64
        $region63: #{tpu_custom_call.1} parent=47 // pred_region
          %321 = dma.done [#allocation9], 512
        $region64: #{tpu_custom_call.1} parent=47 // pred_fallthru
          _
        // Predicated region
        $region65: #{tpu_custom_call.1} parent=47 // pred_check
          %p322 = pneg %p131
        $region66: #{tpu_custom_call.1} parent=47 // pred_check_branch
          %324 = sbr.rel (%p322) target = $region68
        $region67: #{tpu_custom_call.1} parent=47 // pred_region
          %325 = dma.done [#allocation9], 512
        $region68: #{tpu_custom_call.1} parent=47 // pred_fallthru
          _
        %s326 = sand.u32 %s34, 1
        %s327 = scalar_lea.sflag [#allocation3], %s326
        %s328 = sand.u32 %s34, 1
        %s329 = smul.addr %s328, 8
        %s330 = scalar_lea.vmem [#allocation2], %s329
        %p331 = pneg %p47
        %p332 = pneg %p44
        %p333 = pneg %p68
        %p334 = pneg %p65
        %p335 = pneg %p89
        %p336 = pneg %p86
        %p337 = pneg %p110
        %p338 = pneg %p107
        %p339 = pneg %p131
        %p340 = pneg %p128
        %p341 = pneg %p152
        %p342 = pneg %p149
        %p343 = pneg %p173
        %p344 = pneg %p170
        %p345 = pneg %p199
        %p346 = pneg %p196
        %s347 = sand.u32 %s186, 1
        %s348 = scalar_lea.sflag [#allocation4], %s347
        %s349 = sand.u32 %s186, 1
        %s350 = smul.addr %s349, 8
        %s351 = scalar_lea.vmem [#allocation11], %s350
        %v352 = vld [vmem:[%s305] sm:$0xff]
        %v353 = vld [vmem:[#allocation5] sm:$0xff]
        %v354 = vld [vmem:[#allocation5 + $0x8] sm:$0xff]
        %v355 = vld [vmem:[%s5] sm:$0x1]
        %v356 = vlaneseq
        %v357 = vshrl.u32 %v356, 7
        %v358 = vsub.s32 0, %v357
        %v359 = vrot.slane %v355, %v358
        %vm360 = vcmask 130048
        %v362 = vsel %vm360, %v352, 0
        %364 = vmatprep.subr.mxu0 0.0
        %365 = vmatpush1.msra.mxu0 %v353
        %366 = vmatprep.subr.mxu0 0.0
        %367 = vmatpush1.msra.mxu0 %v354
        %368 = vmatprep.subr.mxu0 0.0
        %369 = vmatpush1.msra.mxu0 0.0
        %370 = vmatprep.subr.mxu0 0.0
        %371 = vmatpush1.msra.mxu0 0.0
        %372 = vmatprep.subr.mxu0 0.0
        %373 = vmatpush1.msra.mxu0 0.0
        %374 = vmatprep.subr.mxu0 0.0
        %375 = vmatpush1.msra.mxu0 0.0
        %376 = vmatprep.subr.mxu0 0.0
        %377 = vmatpush1.msra.mxu0 0.0
        %378 = vmatprep.subr.mxu0 0.0
        %379 = vmatpush1.msra.mxu0 0.0
        %380 = vmatprep.subr.mxu0 0.0
        %381 = vmatpush1.msra.mxu0 0.0
        %382 = vmatprep.subr.mxu0 0.0
        %383 = vmatpush1.msra.mxu0 0.0
        %384 = vmatprep.subr.mxu0 0.0
        %385 = vmatpush1.msra.mxu0 0.0
        %386 = vmatprep.subr.mxu0 0.0
        %387 = vmatpush1.msra.mxu0 0.0
        %388 = vmatprep.subr.mxu0 0.0
        %389 = vmatpush1.msra.mxu0 0.0
        %390 = vmatprep.subr.mxu0 0.0
        %391 = vmatpush1.msra.mxu0 0.0
        %392 = vmatprep.subr.mxu0 0.0
        %393 = vmatpush1.msra.mxu0 0.0
        %394 = vmatprep.subr.mxu0 0.0
        %395 = vmatpush1.msra.mxu0 0.0
        %396 = vmatprep.subr.mxu0 0.0
        %397 = vmatpush1.msra.mxu0 0.0
        %398 = vmatprep.subr.mxu0 0.0
        %399 = vmatpush1.msra.mxu0 0.0
        %400 = vmatprep.subr.mxu0 0.0
        %401 = vmatpush1.msra.mxu0 0.0
        %402 = vmatprep.subr.mxu0 0.0
        %403 = vmatpush1.msra.mxu0 0.0
        %404 = vmatprep.subr.mxu0 0.0
        %405 = vmatpush1.msra.mxu0 0.0
        %406 = vmatprep.subr.mxu0 0.0
        %407 = vmatpush1.msra.mxu0 0.0
        %408 = vmatprep.subr.mxu0 0.0
        %409 = vmatpush1.msra.mxu0 0.0
        %410 = vmatprep.subr.mxu0 0.0
        %411 = vmatpush1.msra.mxu0 0.0
        %412 = vmatprep.subr.mxu0 0.0
        %413 = vmatpush1.msra.mxu0 0.0
        %414 = vmatprep.subr.mxu0 0.0
        %415 = vmatpush1.msra.mxu0 0.0
        %416 = vmatprep.subr.mxu0 0.0
        %417 = vmatpush1.msra.mxu0 0.0
        %418 = vmatprep.subr.mxu0 0.0
        %419 = vmatpush1.msra.mxu0 0.0
        %420 = vmatprep.subr.mxu0 0.0
        %421 = vmatpush1.msra.mxu0 0.0
        %422 = vmatprep.subr.mxu0 0.0
        %423 = vmatpush1.msra.mxu0 0.0
        %424 = vmatprep.subr.mxu0 0.0
        %425 = vmatpush1.msra.mxu0 0.0
        %426 = vmatprep.subr.mxu0 0.0
        %427 = vmatpush1.msra.mxu0 0.0
        %428 = vmatprep.mubr.f32.mxu0 0.0
        %429 = vmatmul.mubr.f32.gmra.mrb[0].mxu0 %v362
        %v430 = vpop.f32.mrb[0].mxu0
        %v431 = vadd.f32 %v359, %v430
        %v432 = vpop.f32.mrb[0].mxu0
        %433 = vdwg.mxu0
        %v434 = vld [vmem:[%s5 + $0x1] sm:$0x1]
        %v435 = vld [vmem:[%s5 + $0x2] sm:$0x1]
        %vm436 = vcmp.ge.f32.partialorder %v431, 0.0
        %v437 = vmul.f32 %v431, 0.01
        %v438 = vsel %vm436, %v431, %v437
        %vm439 = vcmask 261120
        %v440 = vsel %vm439, %v438, 0.0
        %441 = vadd.xlane.f32.xlu0 %v440
        %v442 = vpop.xlane.xlu0 %441
        %v443 = vrcp.pop 32.0
        %v444 = vmul.f32 %v442, %v443
        %v445 = vsub.f32 %v438, %v444
        %v446 = vmul.f32 %v445, %v445
        %v447 = vsel %vm439, %v446, 0.0
        %448 = vadd.xlane.f32.xlu0 %v447
        %v449 = vpop.xlane.xlu0 %448
        %v450 = vmul.f32 %v449, %v443
        %v451 = vadd.f32 %v450, 1e-05
        %v452 = vrsqrt.pop %v451
        %v453 = vlaneseq
        %v454 = vshrl.u32 %v453, 7
        %v455 = vsub.s32 0, %v454
        %v456 = vrot.slane %v434, %v455
        %v457 = vmul.f32 %v456, %v452
        %v458 = vmul.f32 %v445, %v457
        %v459 = vlaneseq
        %v460 = vshrl.u32 %v459, 7
        %v461 = vsub.s32 0, %v460
        %v462 = vrot.slane %v435, %v461
        %v463 = vadd.f32 %v458, %v462
        %v464 = vld [vmem:[#allocation7] sm:$0xff]
        %v465 = vld [vmem:[#allocation7 + $0x8] sm:$0xff]
        %v466 = vld [vmem:[#allocation7 + $0x10] sm:$0xff]
        %v467 = vld [vmem:[#allocation7 + $0x18] sm:$0xff]
        %v468 = vld [vmem:[%s5 + $0x3] sm:$0x1]
        %v469 = vlaneseq
        %v470 = vshrl.u32 %v469, 7
        %v471 = vsub.s32 0, %v470
        %v472 = vrot.slane %v468, %v471
        %v474 = vsel %vm439, %v463, 0
        %476 = vmatprep.subr.mxu0 0.0
        %477 = vmatpush1.msra.mxu0 %v464
        %478 = vmatprep.subr.mxu0 0.0
        %479 = vmatpush1.msra.mxu0 %v465
        %480 = vmatprep.subr.mxu0 0.0
        %481 = vmatpush1.msra.mxu0 %v466
        %482 = vmatprep.subr.mxu0 0.0
        %483 = vmatpush1.msra.mxu0 %v467
        %484 = vmatprep.subr.mxu0 0.0
        %485 = vmatpush1.msra.mxu0 0.0
        %486 = vmatprep.subr.mxu0 0.0
        %487 = vmatpush1.msra.mxu0 0.0
        %488 = vmatprep.subr.mxu0 0.0
        %489 = vmatpush1.msra.mxu0 0.0
        %490 = vmatprep.subr.mxu0 0.0
        %491 = vmatpush1.msra.mxu0 0.0
        %492 = vmatprep.subr.mxu0 0.0
        %493 = vmatpush1.msra.mxu0 0.0
        %494 = vmatprep.subr.mxu0 0.0
        %495 = vmatpush1.msra.mxu0 0.0
        %496 = vmatprep.subr.mxu0 0.0
        %497 = vmatpush1.msra.mxu0 0.0
        %498 = vmatprep.subr.mxu0 0.0
        %499 = vmatpush1.msra.mxu0 0.0
        %500 = vmatprep.subr.mxu0 0.0
        %501 = vmatpush1.msra.mxu0 0.0
        %502 = vmatprep.subr.mxu0 0.0
        %503 = vmatpush1.msra.mxu0 0.0
        %504 = vmatprep.subr.mxu0 0.0
        %505 = vmatpush1.msra.mxu0 0.0
        %506 = vmatprep.subr.mxu0 0.0
        %507 = vmatpush1.msra.mxu0 0.0
        %508 = vmatprep.subr.mxu0 0.0
        %509 = vmatpush1.msra.mxu0 0.0
        %510 = vmatprep.subr.mxu0 0.0
        %511 = vmatpush1.msra.mxu0 0.0
        %512 = vmatprep.subr.mxu0 0.0
        %513 = vmatpush1.msra.mxu0 0.0
        %514 = vmatprep.subr.mxu0 0.0
        %515 = vmatpush1.msra.mxu0 0.0
        %516 = vmatprep.subr.mxu0 0.0
        %517 = vmatpush1.msra.mxu0 0.0
        %518 = vmatprep.subr.mxu0 0.0
        %519 = vmatpush1.msra.mxu0 0.0
        %520 = vmatprep.subr.mxu0 0.0
        %521 = vmatpush1.msra.mxu0 0.0
        %522 = vmatprep.subr.mxu0 0.0
        %523 = vmatpush1.msra.mxu0 0.0
        %524 = vmatprep.subr.mxu0 0.0
        %525 = vmatpush1.msra.mxu0 0.0
        %526 = vmatprep.subr.mxu0 0.0
        %527 = vmatpush1.msra.mxu0 0.0
        %528 = vmatprep.subr.mxu0 0.0
        %529 = vmatpush1.msra.mxu0 0.0
        %530 = vmatprep.subr.mxu0 0.0
        %531 = vmatpush1.msra.mxu0 0.0
        %532 = vmatprep.subr.mxu0 0.0
        %533 = vmatpush1.msra.mxu0 0.0
        %534 = vmatprep.subr.mxu0 0.0
        %535 = vmatpush1.msra.mxu0 0.0
        %536 = vmatprep.subr.mxu0 0.0
        %537 = vmatpush1.msra.mxu0 0.0
        %538 = vmatprep.subr.mxu0 0.0
        %539 = vmatpush1.msra.mxu0 0.0
        %540 = vmatprep.mubr.f32.mxu0 0.0
        %541 = vmatmul.mubr.f32.gmra.mrb[0].mxu0 %v474
        %v542 = vpop.f32.mrb[0].mxu0
        %v543 = vadd.f32 %v472, %v542
        %v544 = vpop.f32.mrb[0].mxu0
        %545 = vdwg.mxu0
        %v546 = vld [vmem:[%s5 + $0x4] sm:$0x1]
        %v547 = vld [vmem:[%s5 + $0x5] sm:$0x1]
        %vm548 = vcmp.ge.f32.partialorder %v543, 0.0
        %v549 = vmul.f32 %v543, 0.01
        %v550 = vsel %vm548, %v543, %v549
        %v551 = vsel %vm439, %v550, 0.0
        %552 = vadd.xlane.f32.xlu0 %v551
        %v553 = vpop.xlane.xlu0 %552
        %v554 = vmul.f32 %v553, %v443
        %v555 = vsub.f32 %v550, %v554
        %v556 = vmul.f32 %v555, %v555
        %v557 = vsel %vm439, %v556, 0.0
        %558 = vadd.xlane.f32.xlu0 %v557
        %v559 = vpop.xlane.xlu0 %558
        %v560 = vmul.f32 %v559, %v443
        %v561 = vadd.f32 %v560, 1e-05
        %v562 = vrsqrt.pop %v561
        %v563 = vlaneseq
        %v564 = vshrl.u32 %v563, 7
        %v565 = vsub.s32 0, %v564
        %v566 = vrot.slane %v546, %v565
        %v567 = vmul.f32 %v566, %v562
        %v568 = vmul.f32 %v555, %v567
        %v569 = vlaneseq
        %v570 = vshrl.u32 %v569, 7
        %v571 = vsub.s32 0, %v570
        %v572 = vrot.slane %v547, %v571
        %v573 = vadd.f32 %v568, %v572
        %v574 = vld [vmem:[#allocation8] sm:$0xff]
        %v575 = vld [vmem:[#allocation8 + $0x8] sm:$0xff]
        %v576 = vld [vmem:[#allocation8 + $0x10] sm:$0xff]
        %v577 = vld [vmem:[#allocation8 + $0x18] sm:$0xff]
        %v578 = vld [vmem:[%s5 + $0x6] sm:$0x1]
        %v579 = vlaneseq
        %v580 = vshrl.u32 %v579, 7
        %v581 = vsub.s32 0, %v580
        %v582 = vrot.slane %v578, %v581
        %v584 = vsel %vm439, %v573, 0
        %586 = vmatprep.subr.mxu0 0.0
        %587 = vmatpush1.msra.mxu0 %v574
        %588 = vmatprep.subr.mxu0 0.0
        %589 = vmatpush1.msra.mxu0 %v575
        %590 = vmatprep.subr.mxu0 0.0
        %591 = vmatpush1.msra.mxu0 %v576
        %592 = vmatprep.subr.mxu0 0.0
        %593 = vmatpush1.msra.mxu0 %v577
        %594 = vmatprep.subr.mxu0 0.0
        %595 = vmatpush1.msra.mxu0 0.0
        %596 = vmatprep.subr.mxu0 0.0
        %597 = vmatpush1.msra.mxu0 0.0
        %598 = vmatprep.subr.mxu0 0.0
        %599 = vmatpush1.msra.mxu0 0.0
        %600 = vmatprep.subr.mxu0 0.0
        %601 = vmatpush1.msra.mxu0 0.0
        %602 = vmatprep.subr.mxu0 0.0
        %603 = vmatpush1.msra.mxu0 0.0
        %604 = vmatprep.subr.mxu0 0.0
        %605 = vmatpush1.msra.mxu0 0.0
        %606 = vmatprep.subr.mxu0 0.0
        %607 = vmatpush1.msra.mxu0 0.0
        %608 = vmatprep.subr.mxu0 0.0
        %609 = vmatpush1.msra.mxu0 0.0
        %610 = vmatprep.subr.mxu0 0.0
        %611 = vmatpush1.msra.mxu0 0.0
        %612 = vmatprep.subr.mxu0 0.0
        %613 = vmatpush1.msra.mxu0 0.0
        %614 = vmatprep.subr.mxu0 0.0
        %615 = vmatpush1.msra.mxu0 0.0
        %616 = vmatprep.subr.mxu0 0.0
        %617 = vmatpush1.msra.mxu0 0.0
        %618 = vmatprep.subr.mxu0 0.0
        %619 = vmatpush1.msra.mxu0 0.0
        %620 = vmatprep.subr.mxu0 0.0
        %621 = vmatpush1.msra.mxu0 0.0
        %622 = vmatprep.subr.mxu0 0.0
        %623 = vmatpush1.msra.mxu0 0.0
        %624 = vmatprep.subr.mxu0 0.0
        %625 = vmatpush1.msra.mxu0 0.0
        %626 = vmatprep.subr.mxu0 0.0
        %627 = vmatpush1.msra.mxu0 0.0
        %628 = vmatprep.subr.mxu0 0.0
        %629 = vmatpush1.msra.mxu0 0.0
        %630 = vmatprep.subr.mxu0 0.0
        %631 = vmatpush1.msra.mxu0 0.0
        %632 = vmatprep.subr.mxu0 0.0
        %633 = vmatpush1.msra.mxu0 0.0
        %634 = vmatprep.subr.mxu0 0.0
        %635 = vmatpush1.msra.mxu0 0.0
        %636 = vmatprep.subr.mxu0 0.0
        %637 = vmatpush1.msra.mxu0 0.0
        %638 = vmatprep.subr.mxu0 0.0
        %639 = vmatpush1.msra.mxu0 0.0
        %640 = vmatprep.subr.mxu0 0.0
        %641 = vmatpush1.msra.mxu0 0.0
        %642 = vmatprep.subr.mxu0 0.0
        %643 = vmatpush1.msra.mxu0 0.0
        %644 = vmatprep.subr.mxu0 0.0
        %645 = vmatpush1.msra.mxu0 0.0
        %646 = vmatprep.subr.mxu0 0.0
        %647 = vmatpush1.msra.mxu0 0.0
        %648 = vmatprep.subr.mxu0 0.0
        %649 = vmatpush1.msra.mxu0 0.0
        %650 = vmatprep.mubr.f32.mxu0 0.0
        %651 = vmatmul.mubr.f32.gmra.mrb[0].mxu0 %v584
        %v652 = vpop.f32.mrb[0].mxu0
        %v653 = vadd.f32 %v582, %v652
        %v654 = vpop.f32.mrb[0].mxu0
        %655 = vdwg.mxu0
        %v656 = vld [vmem:[%s5 + $0x7] sm:$0x1]
        %v657 = vld [vmem:[%s5 + $0x8] sm:$0x1]
        %vm658 = vcmp.ge.f32.partialorder %v653, 0.0
        %v659 = vmul.f32 %v653, 0.01
        %v660 = vsel %vm658, %v653, %v659
        %v661 = vsel %vm439, %v660, 0.0
        %662 = vadd.xlane.f32.xlu0 %v661
        %v663 = vpop.xlane.xlu0 %662
        %v664 = vmul.f32 %v663, %v443
        %v665 = vsub.f32 %v660, %v664
        %v666 = vmul.f32 %v665, %v665
        %v667 = vsel %vm439, %v666, 0.0
        %668 = vadd.xlane.f32.xlu0 %v667
        %v669 = vpop.xlane.xlu0 %668
        %v670 = vmul.f32 %v669, %v443
        %v671 = vadd.f32 %v670, 1e-05
        %v672 = vrsqrt.pop %v671
        %v673 = vlaneseq
        %v674 = vshrl.u32 %v673, 7
        %v675 = vsub.s32 0, %v674
        %v676 = vrot.slane %v656, %v675
        %v677 = vmul.f32 %v676, %v672
        %v678 = vmul.f32 %v665, %v677
        %v679 = vlaneseq
        %v680 = vshrl.u32 %v679, 7
        %v681 = vsub.s32 0, %v680
        %v682 = vrot.slane %v657, %v681
        %v683 = vadd.f32 %v678, %v682
        %v684 = vadd.f32 %v683, %v573
        %v685 = vld [vmem:[#allocation10] sm:$0xff]
        %v686 = vld [vmem:[#allocation10 + $0x8] sm:$0xff]
        %v687 = vld [vmem:[#allocation10 + $0x10] sm:$0xff]
        %v688 = vld [vmem:[#allocation10 + $0x18] sm:$0xff]
        %v689 = vld [vmem:[%s6] sm:$0x1]
        %v691 = vlaneseq
        %v692 = vshrl.u32 %v691, 7
        %v693 = vsub.s32 0, %v692
        %v694 = vrot.slane %v689, %v693
        %v697 = vsel %vm439, %v684, 0
        %699 = vmatprep.subr.mxu0 0.0
        %700 = vmatpush1.msra.mxu0 %v685
        %701 = vmatprep.subr.mxu0 0.0
        %702 = vmatpush1.msra.mxu0 %v686
        %703 = vmatprep.subr.mxu0 0.0
        %704 = vmatpush1.msra.mxu0 %v687
        %705 = vmatprep.subr.mxu0 0.0
        %706 = vmatpush1.msra.mxu0 %v688
        %707 = vmatprep.subr.mxu0 0.0
        %708 = vmatpush1.msra.mxu0 0.0
        %709 = vmatprep.subr.mxu0 0.0
        %710 = vmatpush1.msra.mxu0 0.0
        %711 = vmatprep.subr.mxu0 0.0
        %712 = vmatpush1.msra.mxu0 0.0
        %713 = vmatprep.subr.mxu0 0.0
        %714 = vmatpush1.msra.mxu0 0.0
        %715 = vmatprep.subr.mxu0 0.0
        %716 = vmatpush1.msra.mxu0 0.0
        %717 = vmatprep.subr.mxu0 0.0
        %718 = vmatpush1.msra.mxu0 0.0
        %719 = vmatprep.subr.mxu0 0.0
        %720 = vmatpush1.msra.mxu0 0.0
        %721 = vmatprep.subr.mxu0 0.0
        %722 = vmatpush1.msra.mxu0 0.0
        %723 = vmatprep.subr.mxu0 0.0
        %724 = vmatpush1.msra.mxu0 0.0
        %725 = vmatprep.subr.mxu0 0.0
        %726 = vmatpush1.msra.mxu0 0.0
        %727 = vmatprep.subr.mxu0 0.0
        %728 = vmatpush1.msra.mxu0 0.0
        %729 = vmatprep.subr.mxu0 0.0
        %730 = vmatpush1.msra.mxu0 0.0
        %731 = vmatprep.subr.mxu0 0.0
        %732 = vmatpush1.msra.mxu0 0.0
        %733 = vmatprep.subr.mxu0 0.0
        %734 = vmatpush1.msra.mxu0 0.0
        %735 = vmatprep.subr.mxu0 0.0
        %736 = vmatpush1.msra.mxu0 0.0
        %737 = vmatprep.subr.mxu0 0.0
        %738 = vmatpush1.msra.mxu0 0.0
        %739 = vmatprep.subr.mxu0 0.0
        %740 = vmatpush1.msra.mxu0 0.0
        %741 = vmatprep.subr.mxu0 0.0
        %742 = vmatpush1.msra.mxu0 0.0
        %743 = vmatprep.subr.mxu0 0.0
        %744 = vmatpush1.msra.mxu0 0.0
        %745 = vmatprep.subr.mxu0 0.0
        %746 = vmatpush1.msra.mxu0 0.0
        %747 = vmatprep.subr.mxu0 0.0
        %748 = vmatpush1.msra.mxu0 0.0
        %749 = vmatprep.subr.mxu0 0.0
        %750 = vmatpush1.msra.mxu0 0.0
        %751 = vmatprep.subr.mxu0 0.0
        %752 = vmatpush1.msra.mxu0 0.0
        %753 = vmatprep.subr.mxu0 0.0
        %754 = vmatpush1.msra.mxu0 0.0
        %755 = vmatprep.subr.mxu0 0.0
        %756 = vmatpush1.msra.mxu0 0.0
        %757 = vmatprep.subr.mxu0 0.0
        %758 = vmatpush1.msra.mxu0 0.0
        %759 = vmatprep.subr.mxu0 0.0
        %760 = vmatpush1.msra.mxu0 0.0
        %761 = vmatprep.subr.mxu0 0.0
        %762 = vmatpush1.msra.mxu0 0.0
        %763 = vmatprep.mubr.f32.mxu0 0.0
        %764 = vmatmul.mubr.f32.gmra.mrb[0].mxu0 %v697
        %v765 = vpop.f32.mrb[0].mxu0
        %v766 = vadd.f32 %v694, %v765
        %v767 = vpop.f32.mrb[0].mxu0
        %768 = vdwg.mxu0
        %769 = vst [vmem:[%s351] sm:$0xff] %v766
        %s770 = sand.u32 %s186, 1
        %s771 = scalar_lea.sflag [#allocation4], %s770
        %s772 = sand.u32 %s186, 1
        %s773 = smul.addr %s772, 8
        %s774 = scalar_lea.vmem [#allocation11], %s773
        // Predicated region
        $region69: #{tpu_custom_call.1} parent=47 // pred_check
          %p775 = pneg %p196
        $region70: #{tpu_custom_call.1} parent=47 // pred_check_branch
          %777 = sbr.rel (%p775) target = $region72
        $region71: #{tpu_custom_call.1} parent=47 // pred_region
          %s779 = ssub.s32 128, 128
          %780 = vsyncadd %s771, %s779
          %s781 = smul.addr %s26, 128
          %s782 = scalar_lea.hbm %s7, %s781
          %s784 = sshll.u32 %s774, 4
          %s785 = int_to_ptr.vmem [resolvable:$true] %s784
          %787 = dma.vmem_to_hbm [thread:$0]  %s785, 128, %s782, %s771
        $region72: #{tpu_custom_call.1} parent=47 // pred_fallthru
          _
      $region48: #{tpu_custom_call.1} parent=5 // pred_fallthru
        _
      %p788 = scmp.le.s32.totalorder 2, %s21
      // Predicated region
      $region73: #{tpu_custom_call.1} parent=5 // pred_check
        %p789 = pneg %p788
      $region74: #{tpu_custom_call.1} parent=5 // pred_check_branch
        %791 = sbr.rel (%p789) target = $region76
      $region75: #{tpu_custom_call.1} parent=5 // pred_region
        %s792 = ssub.s32 %s21, 2
        // Predicated region
        $region77: #{tpu_custom_call.1} parent=75 // pred_check
          %p793 = pneg %p202
        $region78: #{tpu_custom_call.1} parent=75 // pred_check_branch
          %795 = sbr.rel (%p793) target = $region80
        $region79: #{tpu_custom_call.1} parent=75 // pred_region
          %s796 = sand.u32 %s187, 1
          %s797 = scalar_lea.sflag [#allocation4], %s796
          %s798 = sand.u32 %s187, 1
          %s799 = smul.addr %s798, 8
          %s800 = scalar_lea.vmem [#allocation11], %s799
          %801 = dma.done %s797, 128
        $region80: #{tpu_custom_call.1} parent=75 // pred_fallthru
          _
      $region76: #{tpu_custom_call.1} parent=5 // pred_fallthru
        _
    $region6: #{tpu_custom_call.1} parent=1 // loop_footer
      %s25 = sadd.s32 1, %s21
    $region7: #{tpu_custom_call.1} parent=1 // loop_footer_branch
      %20 = sbr.rel target = $region3
    $region8: #{tpu_custom_call.1} parent=1 // loop_exit
      _
    %802 = vsyncpa [#allocation3], 1
    %s803 = scalar_lea.sflag [#allocation3], 1
    %804 = vsyncpa %s803, 1
    %805 = vsyncpa [#allocation6], 1
    %806 = vsyncpa [#allocation9], 1
    %807 = vsyncpa [#allocation4], 1
    %s808 = scalar_lea.sflag [#allocation4], 1
    %809 = vsyncpa %s808, 1

</llo_original>
